<compile_context>
chip_gen: v5e
topology: v5e:2x2
jax: 0.10.0
libtpu: 0.0.40
codegen_flags: <defaults>
</compile_context>

<pallas_src>
import math
from functools import partial

import jax
import jax.numpy as jnp
from jax.experimental import pallas as pl
from jax.experimental.pallas import tpu as pltpu


def _round_up(x, m):
    return ((x + m - 1) // m) * m


def _pick_row_tile(n, target=512):
    """512-row tiles for large N (near HBM roofline); small N in one 8-aligned tile."""
    return target if n >= target else _round_up(max(n, 1), 8)


# ----------------------------------------------------------------------------
# Kernel 1: router — cosine-similarity logits + gumbel softmax (tau = 0.1).
#           Gumbel noise is streamed in from the wrapper (portable everywhere).
# ----------------------------------------------------------------------------
def _router_kernel(ce_ref, can_ref, g_ref, w_ref):
    ce = ce_ref[...]                                             # [TN, C] f32
    ce_n = ce * jax.lax.rsqrt(
        jnp.maximum(jnp.sum(ce * ce, axis=-1, keepdims=True), 1e-24))

    # normalize(code_emb) @ normalize(code_anchor).T * 0.125 (anchors pre-normalized)
    logits = jax.lax.dot_general(
        ce_n, can_ref[...], (((1,), (1,)), ((), ())),
        preferred_element_type=jnp.float32) * 0.125              # [TN, E]

    # gumbel_softmax(logits, tau=0.1, hard=False)
    z = (logits + g_ref[...]) * 10.0
    z = z - jnp.max(z, axis=-1, keepdims=True)
    ez = jnp.exp(z)
    w_ref[...] = ez / jnp.sum(ez, axis=-1, keepdims=True)


def _router(ce_flat, anchor_norm, gumbel_noise):
    n, c = ce_flat.shape
    e = anchor_norm.shape[0]
    tn = _pick_row_tile(n)
    n_pad = _round_up(n, tn)
    if n_pad != n:
        pad = ((0, n_pad - n), (0, 0))
        ce_flat = jnp.pad(ce_flat, pad)
        gumbel_noise = jnp.pad(gumbel_noise, pad)

    cost = pl.CostEstimate(
        flops=int(2 * n_pad * c * e + 10 * n_pad * e + 3 * n_pad * c),
        transcendentals=int(2 * n_pad * e + n_pad),
        bytes_accessed=int(4 * (n_pad * c + e * c + 2 * n_pad * e)),
    )
    out = pl.pallas_call(
        _router_kernel,
        grid=(n_pad // tn,),
        in_specs=[
            pl.BlockSpec((tn, c), lambda i: (i, 0)),       # code_emb tile
            pl.BlockSpec((e, c), lambda i: (0, 0)),        # anchors (resident)
            pl.BlockSpec((tn, e), lambda i: (i, 0)),       # gumbel noise tile
        ],
        out_specs=pl.BlockSpec((tn, e), lambda i: (i, 0)),
        out_shape=jax.ShapeDtypeStruct((n_pad, e), jnp.float32),
        compiler_params=pltpu.CompilerParams(
            dimension_semantics=("parallel",)),
        cost_estimate=cost,
    )(ce_flat, anchor_norm, gumbel_noise)
    return out[:n]


# ----------------------------------------------------------------------------
# Kernel 2: expert MLPs — fused GEMM1 across all experts (importance folded
#           into W1 in the wrapper), block-diagonal GEMM2 per expert, gated,
#           one lane-dense [TN, E*S] store.  Weights fully VMEM-resident.
# ----------------------------------------------------------------------------
def _moe_kernel(x_ref, gate_ref, w1_ref, b1_ref, w2_ref, b2_ref, out_ref,
                *, num_experts, two_h):
    x = x_ref[...]                                               # [TN, H+C] bf16
    gate = gate_ref[...]                                         # [TN, E]   f32

    # GEMM1 fused across all experts: [TN, H+C] @ [H+C, E*2H] -> f32 acc.
    z = jnp.dot(x, w1_ref[...], preferred_element_type=jnp.float32) + b1_ref[...]

    # exact (erf) GELU — matches torch.nn.GELU() default
    z = 0.5 * z * (1.0 + jax.lax.erf(z * (1.0 / math.sqrt(2.0))))

    # GEMM2 per expert (block-diagonal), gated; single lane-dense store.
    outs = []
    for e in range(num_experts):                                 # static unroll
        z_e = z[:, e * two_h:(e + 1) * two_h].astype(jnp.bfloat16)
        o_e = jnp.dot(z_e, w2_ref[e],
                      preferred_element_type=jnp.float32) + b2_ref[e]   # [TN, S]
        outs.append(o_e * gate[:, e:e + 1])
    out_ref[...] = jnp.concatenate(outs, axis=-1)                # [TN, E*S] f32


def _moe_experts(x_bf16, gate, w1_all, b1_all, w2, b2):
    n, hc = x_bf16.shape
    e, two_h, s = w2.shape
    out_dim = e * s

    tn = _pick_row_tile(n)
    n_pad = _round_up(n, tn)
    if n_pad != n:
        x_bf16 = jnp.pad(x_bf16, ((0, n_pad - n), (0, 0)))
        gate = jnp.pad(gate, ((0, n_pad - n), (0, 0)))

    weight_bytes = w1_all.size * 2 + b1_all.size * 4 + w2.size * 2 + b2.size * 4
    tile_bytes = tn * (hc * 2 + e * 4 + out_dim * 4) + tn * e * two_h * 4
    # resident weights + double-buffered activation/output tiles + slack,
    # capped at 40 MiB so it stays comfortable on v7x's 64 MiB per-TC VMEM.
    vmem_limit = int(min(max(2 * (weight_bytes + 2 * tile_bytes), 32 << 20), 40 << 20))

    cost = pl.CostEstimate(
        flops=int(2 * n_pad * hc * e * two_h + 2 * n_pad * two_h * s * e),
        transcendentals=int(n_pad * e * two_h),
        bytes_accessed=int(2 * n_pad * hc + 4 * n_pad * e + weight_bytes
                           + 4 * n_pad * out_dim),
    )

    kernel = partial(_moe_kernel, num_experts=e, two_h=two_h)
    out = pl.pallas_call(
        kernel,
        grid=(n_pad // tn,),
        in_specs=[
            pl.BlockSpec((tn, hc), lambda i: (i, 0)),            # activations (bf16)
            pl.BlockSpec((tn, e), lambda i: (i, 0)),             # masked gate (f32)
            pl.BlockSpec((hc, e * two_h), lambda i: (0, 0)),     # W1 (resident, bf16)
            pl.BlockSpec((1, e * two_h), lambda i: (0, 0)),      # b1 (resident, f32)
            pl.BlockSpec((e, two_h, s), lambda i: (0, 0, 0)),    # W2 (resident, bf16)
            pl.BlockSpec((e, 1, s), lambda i: (0, 0, 0)),        # b2 (resident, f32)
        ],
        out_specs=pl.BlockSpec((tn, out_dim), lambda i: (i, 0)),
        out_shape=jax.ShapeDtypeStruct((n_pad, out_dim), jnp.float32),
        compiler_params=pltpu.CompilerParams(
            dimension_semantics=("parallel",),
            vmem_limit_bytes=vmem_limit),
        cost_estimate=cost,
    )(x_bf16, gate, w1_all, b1_all, w2, b2)
    return out[:n]


# ----------------------------------------------------------------------------
# Module wrapper (glue: flatten, noise, top-k mask, importance fold, aux loss)
# ----------------------------------------------------------------------------
def importance_weighted_moe(h, code_emb, params, *, top_k=2, importance_reg=0.01,
                            gumbel_key=None, gumbel_noise=None):
    assert h.ndim == 3 and code_emb.ndim == 3, "3-D path only (see TODOs)"
    B, T, H = h.shape
    C = code_emb.shape[-1]
    E = params["code_anchor"].shape[0]
    S = params["w2"].shape[-1]
    N = B * T
    assert params["feature_importance"].shape[-1] == H, \
        "hidden_dim must equal hidden_state_dim (F.pad path not implemented)"

    h_flat = h.reshape(N, H).astype(jnp.float32)
    ce_flat = code_emb.reshape(N, C).astype(jnp.float32)

    # ---- routing: cosine logits + gumbel softmax (Pallas kernel) -----------
    anchor = params["code_anchor"].astype(jnp.float32)
    anchor_n = anchor * jax.lax.rsqrt(
        jnp.maximum(jnp.sum(anchor * anchor, axis=-1, keepdims=True), 1e-24))

    if gumbel_noise is None:
        assert gumbel_key is not None, "pass gumbel_key or gumbel_noise"
        gumbel_noise = jax.random.gumbel(gumbel_key, (N, E), jnp.float32)

    expert_weights = _router(ce_flat, anchor_n, gumbel_noise)    # [N, E]

    # top-k mask (plain JAX glue; equals torch.topk + scatter_)
    safe_top_k = max(1, min(top_k, E))
    _, topk_idx = jax.lax.top_k(expert_weights, safe_top_k)
    mask = jnp.minimum(
        jnp.sum(jax.nn.one_hot(topk_idx, E, dtype=jnp.float32), axis=1), 1.0)
    masked_weights = expert_weights * mask                       # [N, E]

    # ---- importance softmax + entropy (tiny [E, H]; stays in JAX) ----------
    temperature = jnp.clip(params["importance_temperature"], 0.1, 5.0)
    importance = jax.nn.softmax(
        params["feature_importance"].astype(jnp.float32) / temperature, axis=-1)
    entropies = -jnp.sum(importance * jnp.log(importance + 1e-8), axis=-1)   # [E]

    # ---- fold importance into W1, fuse experts along the output axis -------
    w1 = params["w1"].astype(jnp.float32)                        # [E, H+C, 2H]
    two_h = w1.shape[-1]
    w1_folded = jnp.concatenate(
        [w1[:, :H, :] * importance[:, :, None], w1[:, H:, :]], axis=1)
    w1_all = jnp.transpose(w1_folded, (1, 0, 2)).reshape(H + C, E * two_h)
    w1_all = w1_all.astype(jnp.bfloat16)
    b1_all = params["b1"].astype(jnp.float32).reshape(1, E * two_h)
    w2 = params["w2"].astype(jnp.bfloat16)                       # [E, 2H, S]
    b2 = params["b2"].astype(jnp.float32).reshape(E, 1, S)

    # activations pre-concatenated and pre-cast (importance already inside W1)
    x = jnp.concatenate([h_flat, ce_flat], axis=-1).astype(jnp.bfloat16)

    full_out_flat = _moe_experts(x, masked_weights, w1_all, b1_all, w2, b2)
    full_output = full_out_flat.reshape(B, T, E * S)

    # ---- auxiliary loss (matches torch: masked weights, unbiased std) ------
    expert_counts = masked_weights.reshape(B, T, E).sum(axis=0)  # [T, E]
    expert_load = expert_counts / (expert_counts.sum() + 1e-8)
    routing_loss = 0.5 * (jnp.std(expert_counts, ddof=1)
                          + (-expert_load * jnp.log(expert_load + 1e-8)).sum())
    aux_loss = routing_loss - importance_reg * jnp.mean(entropies)

    importance_stats = {"entropy": entropies, "mean": [0.0] * E, "std": [0.0] * E}
    return full_output, aux_loss, importance_stats


# ----------------------------------------------------------------------------
# Deterministic parameter construction (mirrors __init__ shapes / inits)
# ----------------------------------------------------------------------------
def init_params(key, num_experts, hidden_state_dim, hidden_dim, code_dim):
    E, H, HD, C = num_experts, hidden_state_dim, hidden_dim, code_dim
    S = 1024 // E
    k_anchor, k_fi, k_w1, k_b1, k_b2 = jax.random.split(key, 5)

    code_anchor = 0.5 * jax.random.normal(k_anchor, (E, C), jnp.float32)
    feature_importance = 0.01 * jax.random.normal(k_fi, (E, HD), jnp.float32)
    # expert[i][0].weight ~ N(anchor[i, 0], 0.01); stored transposed [in, out]
    w1 = (code_anchor[:, 0][:, None, None]
          + 0.01 * jax.random.normal(k_w1, (E, H + C, 2 * H), jnp.float32))
    bound1 = 1.0 / math.sqrt(H + C)
    b1 = jax.random.uniform(k_b1, (E, 2 * H), jnp.float32, -bound1, bound1)
    w2 = jnp.zeros((E, 2 * H, S), jnp.float32)     # expert[i][-1].weight zero-init
    bound2 = 1.0 / math.sqrt(2 * H)
    b2 = jax.random.uniform(k_b2, (E, S), jnp.float32, -bound2, bound2)

    return {"code_anchor": code_anchor, "feature_importance": feature_importance,
            "w1": w1, "b1": b1, "w2": w2, "b2": b2,
            "importance_temperature": jnp.float32(1.0)}


# ----------------------------------------------------------------------------
# Plain-JAX reference (mirrors the torch forward, per-expert loop) for checking
# ----------------------------------------------------------------------------
def _reference_forward(h, code_emb, params, gumbel_noise, top_k, importance_reg):
    B, T, H = h.shape
    C = code_emb.shape[-1]
    E = params["code_anchor"].shape[0]
    S = params["w2"].shape[-1]
    N = B * T
    hf = h.reshape(N, H).astype(jnp.float32)
    ce = code_emb.reshape(N, C).astype(jnp.float32)

    anchor = params["code_anchor"]
    an = anchor / jnp.maximum(jnp.linalg.norm(anchor, axis=-1, keepdims=True), 1e-12)
    cen = ce / jnp.maximum(jnp.linalg.norm(ce, axis=-1, keepdims=True), 1e-12)
    logits = cen @ an.T * 0.125
    ew = jax.nn.softmax((logits + gumbel_noise) / 0.1, axis=-1)

    k = max(1, min(top_k, E))
    _, idx = jax.lax.top_k(ew, k)
    mask = jnp.minimum(jnp.sum(jax.nn.one_hot(idx, E, dtype=jnp.float32), 1), 1.0)
    mw = ew * mask

    temp = jnp.clip(params["importance_temperature"], 0.1, 5.0)
    imp = jax.nn.softmax(params["feature_importance"] / temp, axis=-1)
    entropies = -jnp.sum(imp * jnp.log(imp + 1e-8), axis=-1)

    outs = []
    for e in range(E):
        x = jnp.concatenate([hf * imp[e], ce], -1).astype(jnp.bfloat16)
        x = x.astype(jnp.float32)
        w1e = params["w1"][e].astype(jnp.bfloat16).astype(jnp.float32)
        z = x @ w1e + params["b1"][e]
        z = 0.5 * z * (1.0 + jax.lax.erf(z / math.sqrt(2.0)))
        w2e = params["w2"][e].astype(jnp.bfloat16).astype(jnp.float32)
        o = z.astype(jnp.bfloat16).astype(jnp.float32) @ w2e + params["b2"][e]
        outs.append(o * mw[:, e:e + 1])
    full = jnp.concatenate(outs, -1).reshape(B, T, E * S)

    counts = mw.reshape(B, T, E).sum(axis=0)
    load = counts / (counts.sum() + 1e-8)
    routing_loss = 0.5 * (jnp.std(counts, ddof=1)
                          + (-load * jnp.log(load + 1e-8)).sum())
    aux = routing_loss - importance_reg * jnp.mean(entropies)
    return full, aux


if __name__ == "__main__":
    key = jax.random.PRNGKey(0)
    k_param, k_h, k_c, k_g, k_w2 = jax.random.split(key, 5)

    B, T = 2, 8
    num_experts, hidden_state_dim, hidden_dim, code_dim = 8, 32, 32, 16

    params = init_params(k_param, num_experts, hidden_state_dim, hidden_dim, code_dim)
    h = jax.random.normal(k_h, (B, T, hidden_state_dim), jnp.float32)
    code_emb = jax.random.normal(k_c, (B, T, code_dim), jnp.float32)

    # 1) module-faithful run (second expert layer zero-initialised, as in torch)
    full_output, aux_loss, stats = importance_weighted_moe(
        h, code_emb, params, top_k=2, importance_reg=0.01, gumbel_key=k_g)
    jax.block_until_ready((full_output, aux_loss, stats["entropy"]))
    assert full_output.shape == (B, T, 1024)
    assert aux_loss.shape == ()
    assert bool(jnp.all(jnp.isfinite(full_output)))
    assert bool(jnp.isfinite(aux_loss))

    # 2) numerical check vs the plain-JAX reference with a non-zero second
    #    layer so both GEMMs are exercised (same gumbel noise in both paths).
    params_chk = dict(params)
    params_chk["w2"] = 0.02 * jax.random.normal(k_w2, params["w2"].shape, jnp.float32)
    noise = jax.random.gumbel(k_g, (B * T, num_experts), jnp.float32)
    out_k, aux_k, _ = importance_weighted_moe(
        h, code_emb, params_chk, top_k=2, importance_reg=0.01, gumbel_noise=noise)
    out_r, aux_r = _reference_forward(h, code_emb, params_chk, noise, 2, 0.01)
    assert jnp.allclose(out_k, out_r, rtol=5e-2, atol=5e-2), \
        f"max abs diff {float(jnp.max(jnp.abs(out_k - out_r)))}"
    assert jnp.allclose(aux_k, aux_r, rtol=5e-2, atol=5e-2)

    print("KERNEL_OK")
</pallas_src>

<mosaic_0001>
module attributes {stable_mosaic.version = 11 : i64} {
  func.func @_router_kernel(%arg0: i32, %arg1: memref<16x16xf32, #tpu.memory_space<vmem>>, %arg2: memref<8x16xf32, #tpu.memory_space<vmem>>, %arg3: memref<16x8xf32, #tpu.memory_space<vmem>>, %arg4: memref<16x8xf32, #tpu.memory_space<vmem>>) attributes {dimension_semantics = [#tpu.dimension_semantics<parallel>], iteration_bounds = array<i64: 1>, scalar_prefetch = 0 : i64, scratch_operands = 0 : i64, tpu.core_type = #tpu.core_type<tc>, window_params = [{transform_indices = @transform_0, window_bounds = array<i64: 16, 16>}, {pipeline_mode = #tpu.pipeline_mode<synchronous>, transform_indices = @transform_1, window_bounds = array<i64: 8, 16>}, {transform_indices = @transform_2, window_bounds = array<i64: 16, 8>}, {transform_indices = @transform_3, window_bounds = array<i64: 16, 8>}]} {
    %c0 = arith.constant 0 : index
    %c0_0 = arith.constant 0 : index
    %0 = vector.load %arg1[%c0, %c0_0] : memref<16x16xf32, #tpu.memory_space<vmem>>, vector<16x16xf32>
    %1 = arith.mulf %0, %0 : vector<16x16xf32>
    %cst = arith.constant dense<0.000000e+00> : vector<16xf32>
    %2 = vector.multi_reduction <add>, %1, %cst [1] : vector<16x16xf32> to vector<16xf32>
    %3 = vector.shape_cast %2 : vector<16xf32> to vector<16x1xf32>
    %cst_1 = arith.constant 1.000000e-24 : f32
    %4 = vector.broadcast %cst_1 : f32 to vector<16x1xf32>
    %5 = arith.maximumf %3, %4 : vector<16x1xf32>
    %6 = math.rsqrt %5 : vector<16x1xf32>
    %7 = vector.broadcast %6 : vector<16x1xf32> to vector<16x16xf32>
    %8 = arith.mulf %0, %7 : vector<16x16xf32>
    %c0_2 = arith.constant 0 : index
    %c0_3 = arith.constant 0 : index
    %9 = vector.load %arg2[%c0_2, %c0_3] : memref<8x16xf32, #tpu.memory_space<vmem>>, vector<8x16xf32>
    %cst_4 = arith.constant dense<0.000000e+00> : vector<16x8xf32>
    %10 = tpu.matmul %8, %9, %cst_4 {dimension_numbers = #tpu.dot_dimension_numbers<[1], [1], [0], [0], [0, 0, 1, 0], [], []>} : vector<16x16xf32>, vector<8x16xf32>, vector<16x8xf32> -> vector<16x8xf32>
    %cst_5 = arith.constant 1.250000e-01 : f32
    %11 = vector.broadcast %cst_5 : f32 to vector<16x8xf32>
    %12 = arith.mulf %10, %11 : vector<16x8xf32>
    %c0_6 = arith.constant 0 : index
    %c0_7 = arith.constant 0 : index
    %13 = vector.load %arg3[%c0_6, %c0_7] : memref<16x8xf32, #tpu.memory_space<vmem>>, vector<16x8xf32>
    %14 = arith.addf %12, %13 : vector<16x8xf32>
    %cst_8 = arith.constant 1.000000e+01 : f32
    %15 = vector.broadcast %cst_8 : f32 to vector<16x8xf32>
    %16 = arith.mulf %14, %15 : vector<16x8xf32>
    %cst_9 = arith.constant dense<0xFF800000> : vector<16xf32>
    %17 = vector.multi_reduction <maximumf>, %16, %cst_9 [1] : vector<16x8xf32> to vector<16xf32>
    %18 = vector.shape_cast %17 : vector<16xf32> to vector<16x1xf32>
    %19 = vector.broadcast %18 : vector<16x1xf32> to vector<16x8xf32>
    %20 = arith.subf %16, %19 : vector<16x8xf32>
    %21 = math.exp %20 : vector<16x8xf32>
    %cst_10 = arith.constant dense<0.000000e+00> : vector<16xf32>
    %22 = vector.multi_reduction <add>, %21, %cst_10 [1] : vector<16x8xf32> to vector<16xf32>
    %23 = vector.shape_cast %22 : vector<16xf32> to vector<16x1xf32>
    %24 = vector.broadcast %23 : vector<16x1xf32> to vector<16x8xf32>
    %25 = arith.divf %21, %24 : vector<16x8xf32>
    %c0_11 = arith.constant 0 : index
    %c0_12 = arith.constant 0 : index
    %26 = vector.load %arg4[%c0_11, %c0_12] : memref<16x8xf32, #tpu.memory_space<vmem>>, vector<16x8xf32>
    tpu.vector_store %arg4[%c0_11, %c0_12], %25 {strides = array<i32>} : memref<16x8xf32, #tpu.memory_space<vmem>>, vector<16x8xf32>,
    return
  }
  func.func @transform_0(%arg0: i32) -> (i32, i32) {
    %c0_i32 = arith.constant 0 : i32
    %c0_i32_0 = arith.constant 0 : i32
    return %arg0, %c0_i32 : i32, i32
  }
  func.func @transform_1(%arg0: i32) -> (i32, i32) {
    %c0_i32 = arith.constant 0 : i32
    %c0_i32_0 = arith.constant 0 : i32
    %c0_i32_1 = arith.constant 0 : i32
    return %c0_i32, %c0_i32_0 : i32, i32
  }
  func.func @transform_2(%arg0: i32) -> (i32, i32) {
    %c0_i32 = arith.constant 0 : i32
    %c0_i32_0 = arith.constant 0 : i32
    return %arg0, %c0_i32 : i32, i32
  }
  func.func @transform_3(%arg0: i32) -> (i32, i32) {
    %c0_i32 = arith.constant 0 : i32
    %c0_i32_0 = arith.constant 0 : i32
    return %arg0, %c0_i32 : i32, i32
  }
}

</mosaic_0001>

<llo_original>
// kernel: tpu_custom_call.1
$region0: #{tpu_custom_call.1}
  #allocation0 [shape = 'u32[]', space=smem, size = 0x4, offset = 0x4, fixed_abs, tag = 'smem constant byte address 0x4 - core index']
  #allocation1 [shape = 'u32[72,128]{1,0:T(1,128)}', space=vmem, size = 0x9000, scoped, tag = 'internal scratch']
  %s0 = inlined_call_operand.vmem [shape: f32[16,16], index: 0, kind: input, shape index: {}]
  %s1 = inlined_call_operand.vmem [shape: f32[8,16], index: 1, kind: input, shape index: {}]
  %s2 = inlined_call_operand.vmem [shape: f32[16,8], index: 2, kind: input, shape index: {}]
  %s3 = inlined_call_operand.vmem [shape: f32[16,8], index: 3, kind: output, shape index: {}]
  %s4 = sld [smem:[#allocation0]]
  $region22: #{tpu_custom_call.1} parent=0
    _
  %s6 = ssub.s32 1, %s4
  %s7 = scalar_select 0, %s6, %s4
  // Predicated region
  $region2: #{tpu_custom_call.1} parent=0 // pred_check
    _
  $region3: #{tpu_custom_call.1} parent=0 // pred_check_branch
    %9 = sbr.rel (0) target = $region5
  $region4: #{tpu_custom_call.1} parent=0 // pred_region
    _
  $region5: #{tpu_custom_call.1} parent=0 // pred_fallthru
    _
  // Predicated region
  $region6: #{tpu_custom_call.1} parent=0 // pred_check
    _
  $region7: #{tpu_custom_call.1} parent=0 // pred_check_branch
    %11 = sbr.rel (0) target = $region9
  $region8: #{tpu_custom_call.1} parent=0 // pred_region
    _
  $region9: #{tpu_custom_call.1} parent=0 // pred_fallthru
    _
  // Predicated region
  $region10: #{tpu_custom_call.1} parent=0 // pred_check
    _
  $region11: #{tpu_custom_call.1} parent=0 // pred_check_branch
    %13 = sbr.rel (0) target = $region13
  $region12: #{tpu_custom_call.1} parent=0 // pred_region
    _
  $region13: #{tpu_custom_call.1} parent=0 // pred_fallthru
    _
  %v14 = vld [vmem:[%s0] sm:$0xff]
  %v15 = vld [vmem:[%s0 + $0x8] sm:$0xff]
  %v16 = vmul.f32 %v14, %v14
  %v17 = vmul.f32 %v15, %v15
  %vm18 = vcmask 130048
  %v19 = vsel %vm18, %v16, 0.0
  %20 = vadd.xlane.f32.xlu0 %v19
  %v21 = vpop.xlane.xlu0 %20
  %v22 = vsel %vm18, %v17, 0.0
  %23 = vadd.xlane.f32.xlu0 %v22
  %v24 = vpop.xlane.xlu0 %23
  %v25 = vmax.f32 %v21, 1e-24
  %v26 = vmax.f32 %v24, 1e-24
  %v27 = vrsqrt.pop %v25
  %v28 = vmul.f32 %v27, %v25
  %v29 = vmul.f32 %v28, %v27
  %v30 = vmul.f32 0.5, %v29
  %v31 = vsub.f32 1.5, %v30
  %v32 = vmul.f32 %v27, %v31
  %vm33 = vweird.f32 %v25
  %vm34 = vweird.f32 %v27
  %vm35 = vmor %vm33, %vm34
  %v36 = vsel %vm35, %v27, %v32
  %v37 = vrsqrt.pop %v26
  %v38 = vmul.f32 %v37, %v26
  %v39 = vmul.f32 %v38, %v37
  %v40 = vmul.f32 0.5, %v39
  %v41 = vsub.f32 1.5, %v40
  %v42 = vmul.f32 %v37, %v41
  %vm43 = vweird.f32 %v26
  %vm44 = vweird.f32 %v37
  %vm45 = vmor %vm43, %vm44
  %v46 = vsel %vm45, %v37, %v42
  %v47 = vmul.f32 %v14, %v36
  %v48 = vmul.f32 %v15, %v46
  %v49 = vld [vmem:[%s1] sm:$0xff]
  %v51 = vsel %vm18, %v47, 0
  %v54 = vsel %vm18, %v48, 0
  %v57 = vsel %vm18, %v49, 0
  %59 = vmatpush.xpose.msra.mxu0 0.0
  %60 = vmatpush.xpose.msra.mxu0 0.0
  %61 = vmatpush.xpose.msra.mxu0 0.0
  %62 = vmatpush.xpose.msra.mxu0 0.0
  %63 = vmatpush.xpose.msra.mxu0 0.0
  %64 = vmatpush.xpose.msra.mxu0 0.0
  %65 = vmatpush.xpose.msra.mxu0 0.0
  %66 = vmatpush.xpose.msra.mxu0 0.0
  %67 = vmatpush.xpose.msra.mxu0 0.0
  %68 = vmatpush.xpose.msra.mxu0 0.0
  %69 = vmatpush.xpose.msra.mxu0 0.0
  %70 = vmatpush.xpose.msra.mxu0 0.0
  %71 = vmatpush.xpose.msra.mxu0 0.0
  %72 = vmatpush.xpose.msra.mxu0 0.0
  %73 = vmatpush.xpose.msra.mxu0 0.0
  %74 = vmatpush.xpose.msra.mxu0 %v57
  %75 = vmatmul.f32.gmra.mxu0 %v51
  %v76 = vpop.f32.mrf.mxu0
  %v77 = vadd.f32 0.0, %v76
  %78 = vmatmul.f32.gmra.mxu0 %v54
  %v79 = vpop.f32.mrf.mxu0
  %v80 = vadd.f32 0.0, %v79
  %81 = vdwg.mxu0
  %v82 = vmul.f32 %v77, 0.125
  %v83 = vmul.f32 %v80, 0.125
  %v84 = vld [vmem:[%s2] sm:$0xff]
  %v85 = vld [vmem:[%s2 + $0x8] sm:$0xff]
  %v86 = vadd.f32 %v82, %v84
  %v87 = vadd.f32 %v83, %v85
  %v88 = vmul.f32 %v86, 10.0
  %v89 = vmul.f32 %v87, 10.0
  %vm90 = vcmask 64512
  %v91 = vsel %vm90, %v88, -inf
  %92 = vmax.xlane.f32.xlu0 %v91
  %v93 = vpop.xlane.xlu0 %92
  %v94 = vsel %vm90, %v89, -inf
  %95 = vmax.xlane.f32.xlu0 %v94
  %v96 = vpop.xlane.xlu0 %95
  %v97 = vsub.f32 %v88, %v93
  %v98 = vsub.f32 %v89, %v96
  %v99 = vmul.f32 %v97, 1.442695
  %v100 = vpow.pop %v99
  %v101 = vmul.f32 %v98, 1.442695
  %v102 = vpow.pop %v101
  %v103 = vsel %vm90, %v100, 0.0
  %104 = vadd.xlane.f32.xlu0 %v103
  %v105 = vpop.xlane.xlu0 %104
  %v106 = vsel %vm90, %v102, 0.0
  %107 = vadd.xlane.f32.xlu0 %v106
  %v108 = vpop.xlane.xlu0 %107
  %v109 = vrcp.pop %v105
  %v110 = vmul.f32 %v105, %v109
  %v111 = vsub.f32 1.0, %v110
  %v112 = vmul.f32 %v109, %v111
  %v113 = vadd.f32 %v109, %v112
  %vm114 = vweird.f32 %v105
  %vm115 = vweird.f32 %v109
  %vm116 = vmor %vm114, %vm115
  %v117 = vsel %vm116, %v109, %v113
  %v118 = vand.u32 2147483647, %v105
  %vm119 = vcmp.eq.f32.partialorder %v118, 8.507059e+37
  %v120 = vand.u32 %v105, 2147483648
  %v121 = vor.u32 1.1754944e-38, %v120
  %v122 = vsel %vm119, %v121, %v117
  %v123 = vmul.f32 %v100, %v122
  %v124 = vrcp.pop %v108
  %v125 = vmul.f32 %v108, %v124
  %v126 = vsub.f32 1.0, %v125
  %v127 = vmul.f32 %v124, %v126
  %v128 = vadd.f32 %v124, %v127
  %vm129 = vweird.f32 %v108
  %vm130 = vweird.f32 %v124
  %vm131 = vmor %vm129, %vm130
  %v132 = vsel %vm131, %v124, %v128
  %v133 = vand.u32 2147483647, %v108
  %vm134 = vcmp.eq.f32.partialorder %v133, 8.507059e+37
  %v135 = vand.u32 %v108, 2147483648
  %v136 = vor.u32 1.1754944e-38, %v135
  %v137 = vsel %vm134, %v136, %v132
  %v138 = vmul.f32 %v102, %v137
  %139 = vst.msk [vmem:[%s3] sm:$0xff] %vm90, %v123
  %140 = vst.msk [vmem:[%s3 + $0x8] sm:$0xff] %vm90, %v138
  // Predicated region
  $region14: #{tpu_custom_call.1} parent=0 // pred_check
    _
  $region15: #{tpu_custom_call.1} parent=0 // pred_check_branch
    %142 = sbr.rel (0) target = $region17
  $region16: #{tpu_custom_call.1} parent=0 // pred_region
    _
  $region17: #{tpu_custom_call.1} parent=0 // pred_fallthru
    _
  // Predicated region
  $region18: #{tpu_custom_call.1} parent=0 // pred_check
    _
  $region19: #{tpu_custom_call.1} parent=0 // pred_check_branch
    %144 = sbr.rel (0) target = $region21
  $region20: #{tpu_custom_call.1} parent=0 // pred_region
    _
  $region21: #{tpu_custom_call.1} parent=0 // pred_fallthru
    _

</llo_original>
